<compile_context>
chip_gen: v7x
topology: tpu7x:2x2x1
jax: 0.10.0
libtpu: 0.0.40
codegen_flags: <defaults>
</compile_context>

<pallas_src>
import functools
import math

import jax
import jax.numpy as jnp
from jax.experimental import pallas as pl
from jax.experimental.pallas import tpu as pltpu


_VMEM_LIMIT_BYTES = 64 * 1024 * 1024   # > 16/32 MiB scoped defaults, <= v7x physical VMEM
_VMEM_TILE_BUDGET = 40 * 1024 * 1024   # budget for double-buffered row tiles (headroom)


def _round_up(x, m):
    return ((x + m - 1) // m) * m


def _choose_block_rows(n_rows, row_bytes, target_rows=512):
    """Row-tile size: large (HBM roofline), VMEM-budgeted, >=2 grid steps when possible."""
    br = min(target_rows, max(8, _round_up(pl.cdiv(n_rows, 2), 8)))
    # 2 pipeline buffers for every row-tiled operand.
    while br > 8 and 2 * br * row_bytes > _VMEM_TILE_BUDGET:
        br //= 2
    return _round_up(br, 8)


def _pad_rows(x2, rows_padded):
    rows = x2.shape[0]
    if rows_padded == rows:
        return x2
    return jnp.pad(x2, ((0, rows_padded - rows), (0, 0)))


# ----------------------------- kernels ------------------------------------ #

def _layer_norm_kernel(x_ref, a_ref, b_ref, o_ref, *, eps, feat):
    """LayerNorm over the last (lane) axis of a (rows, D) tile."""
    x = x_ref[...].astype(jnp.float32)                                  # (rows, D)
    mean = jnp.mean(x, axis=-1, keepdims=True)                          # (rows, 1)
    c = x - mean
    var = jnp.sum(c * c, axis=-1, keepdims=True) * (1.0 / (feat - 1))   # unbiased (torch std)
    inv = pl.reciprocal(jnp.sqrt(var) + eps, approx=True)               # (rows, 1) on the EUP
    o_ref[...] = (a_ref[...] * (c * inv) + b_ref[...]).astype(o_ref.dtype)


def _residual_add_kernel(x_ref, y_ref, o_ref):
    """Residual add (dropout is identity in eval mode)."""
    o_ref[...] = x_ref[...] + y_ref[...]


def _fused_sublayer_kernel(x_ref, a_ref, b_ref, w_ref, bias_ref, o_ref, *, eps, feat):
    """out = x + (LayerNorm(x) @ W + bias) for one (rows, D) tile — single HBM pass."""
    x = x_ref[...].astype(jnp.float32)                                  # (rows, D)
    mean = jnp.mean(x, axis=-1, keepdims=True)
    c = x - mean
    var = jnp.sum(c * c, axis=-1, keepdims=True) * (1.0 / (feat - 1))
    inv = pl.reciprocal(jnp.sqrt(var) + eps, approx=True)               # EUP slot
    normed = a_ref[...] * (c * inv) + b_ref[...]
    y = jnp.dot(normed, w_ref[...], preferred_element_type=jnp.float32) + bias_ref[...]
    # TODO(synk): training-mode dropout mask on `y` here via pltpu.prng_seed /
    # pltpu.prng_random_bits (fused epilogue; no extra HBM pass).
    o_ref[...] = (x + y).astype(o_ref.dtype)


# ----------------------------- wrappers ------------------------------------ #

def layer_norm_pallas(x, a_2, b_2, eps=1e-6, block_rows=None):
    orig_shape = x.shape
    D = orig_shape[-1]
    R = math.prod(orig_shape[:-1])
    if block_rows is None:
        block_rows = _choose_block_rows(R, row_bytes=2 * D * 4)   # x in + normed out
    n_tiles = pl.cdiv(R, block_rows)
    Rp = n_tiles * block_rows
    x2 = _pad_rows(x.reshape(R, D), Rp)
    a2 = a_2.reshape(1, D).astype(jnp.float32)
    b2 = b_2.reshape(1, D).astype(jnp.float32)

    kernel = functools.partial(_layer_norm_kernel, eps=eps, feat=D)
    out = pl.pallas_call(
        kernel,
        out_shape=jax.ShapeDtypeStruct((Rp, D), x.dtype),
        grid=(n_tiles,),
        in_specs=[
            pl.BlockSpec((block_rows, D), lambda i: (i, 0)),
            pl.BlockSpec((1, D), lambda i: (0, 0)),
            pl.BlockSpec((1, D), lambda i: (0, 0)),
        ],
        out_specs=pl.BlockSpec((block_rows, D), lambda i: (i, 0)),
        compiler_params=pltpu.CompilerParams(
            dimension_semantics=("parallel",),
            vmem_limit_bytes=_VMEM_LIMIT_BYTES),
    )(x2, a2, b2)
    return out[:R].reshape(orig_shape)


def residual_add_pallas(x, y, block_rows=None):
    orig_shape = x.shape
    D = orig_shape[-1]
    R = math.prod(orig_shape[:-1])
    if block_rows is None:
        block_rows = _choose_block_rows(R, row_bytes=3 * D * 4)   # 2 in + 1 out
    n_tiles = pl.cdiv(R, block_rows)
    Rp = n_tiles * block_rows
    x2 = _pad_rows(x.reshape(R, D), Rp)
    y2 = _pad_rows(y.reshape(R, D), Rp)

    out = pl.pallas_call(
        _residual_add_kernel,
        out_shape=jax.ShapeDtypeStruct((Rp, D), x.dtype),
        grid=(n_tiles,),
        in_specs=[
            pl.BlockSpec((block_rows, D), lambda i: (i, 0)),
            pl.BlockSpec((block_rows, D), lambda i: (i, 0)),
        ],
        out_specs=pl.BlockSpec((block_rows, D), lambda i: (i, 0)),
        input_output_aliases={0: 0},   # write the residual in place of x's buffer
        compiler_params=pltpu.CompilerParams(
            dimension_semantics=("parallel",),
            vmem_limit_bytes=_VMEM_LIMIT_BYTES),
    )(x2, y2)
    return out[:R].reshape(orig_shape)


def sublayer_connection_linear(x, W, bias, a_2, b_2, eps=1e-6, block_rows=None):
    """Fused fast path (linear sublayer): x + (LayerNorm(x) @ W + bias)."""
    orig_shape = x.shape
    D = orig_shape[-1]
    Dout = W.shape[-1]
    assert W.shape == (D, Dout) and Dout == D, "residual needs matching feature dims"
    R = math.prod(orig_shape[:-1])
    if block_rows is None:
        block_rows = _choose_block_rows(R, row_bytes=(D + Dout) * 4)   # x in + out
    n_tiles = pl.cdiv(R, block_rows)
    Rp = n_tiles * block_rows
    x2 = _pad_rows(x.reshape(R, D), Rp)
    a2 = a_2.reshape(1, D).astype(jnp.float32)
    b2 = b_2.reshape(1, D).astype(jnp.float32)
    bias2 = bias.reshape(1, Dout).astype(jnp.float32)
    # NOTE: W is kept whole and resident in VMEM (constant index_map).  For very
    # large D, tile W over (K, N) with a P3 accumulator instead.

    kernel = functools.partial(_fused_sublayer_kernel, eps=eps, feat=D)
    out = pl.pallas_call(
        kernel,
        out_shape=jax.ShapeDtypeStruct((Rp, Dout), x.dtype),
        grid=(n_tiles,),
        in_specs=[
            pl.BlockSpec((block_rows, D), lambda i: (i, 0)),     # x row tile
            pl.BlockSpec((1, D), lambda i: (0, 0)),              # a_2
            pl.BlockSpec((1, D), lambda i: (0, 0)),              # b_2
            pl.BlockSpec((D, Dout), lambda i: (0, 0)),           # W (resident)
            pl.BlockSpec((1, Dout), lambda i: (0, 0)),           # bias
        ],
        out_specs=pl.BlockSpec((block_rows, Dout), lambda i: (i, 0)),
        compiler_params=pltpu.CompilerParams(
            dimension_semantics=("parallel",),
            vmem_limit_bytes=_VMEM_LIMIT_BYTES),
    )(x2, a2, b2, W, bias2)
    return out[:R].reshape(orig_shape)


def sublayer_connection(x, sublayer, a_2, b_2, eps=1e-6):
    """Generic path (arbitrary sublayer): LayerNorm kernel -> user sublayer
    (plain JAX) -> residual-add kernel.  Eval-mode dropout == identity."""
    normed = layer_norm_pallas(x, a_2, b_2, eps=eps)
    y = sublayer(normed)
    return residual_add_pallas(x, y)


# ----------------------------- reference ----------------------------------- #

def _reference(x, a_2, b_2, eps, sublayer):
    mean = jnp.mean(x, axis=-1, keepdims=True)
    std = jnp.std(x, axis=-1, keepdims=True, ddof=1)   # torch unbiased std
    normed = a_2 * (x - mean) / (std + eps) + b_2
    return x + sublayer(normed)


# ----------------------------- main ----------------------------------------- #

if __name__ == "__main__":
    key = jax.random.PRNGKey(0)
    B, S, D = 2, 8, 128          # batch=2, seq=8, size=128 (lane-dense feature dim)
    kx, kw, kb = jax.random.split(key, 3)

    x = jax.random.normal(kx, (B, S, D), dtype=jnp.float32)

    # LayerNorm parameters: ones / zeros per the module's init.
    a_2 = jnp.ones((D,), jnp.float32)
    b_2 = jnp.zeros((D,), jnp.float32)
    eps = 1e-6

    # Example sublayer: a deterministic linear layer (the common case -> fused).
    W = jax.random.normal(kw, (D, D), dtype=jnp.float32) / jnp.sqrt(D)
    bias = 0.01 * jax.random.normal(kb, (D,), dtype=jnp.float32)

    @jax.jit
    def run_fused(x, W, bias, a_2, b_2):
        return sublayer_connection_linear(x, W, bias, a_2, b_2, eps=eps)

    @jax.jit
    def run_generic(x, W, bias, a_2, b_2):
        return sublayer_connection(x, lambda h: h @ W + bias, a_2, b_2, eps=eps)

    out_fused = jax.block_until_ready(run_fused(x, W, bias, a_2, b_2))
    out_generic = jax.block_until_ready(run_generic(x, W, bias, a_2, b_2))

    ref = _reference(x, a_2, b_2, eps, lambda h: h @ W + bias)

    assert out_fused.shape == x.shape and out_fused.dtype == x.dtype
    assert out_generic.shape == x.shape and out_generic.dtype == x.dtype
    # Tolerance reflects the EUP approximate reciprocal on the std column.
    assert jnp.allclose(out_fused, ref, atol=1e-2, rtol=1e-2), "fused mismatch vs reference"
    assert jnp.allclose(out_generic, ref, atol=1e-2, rtol=1e-2), "generic mismatch vs reference"

    print("KERNEL_OK")
</pallas_src>

<mosaic_0001>
module attributes {stable_mosaic.version = 11 : i64} {
  func.func @_fused_sublayer_kernel(%arg0: i32, %arg1: memref<8x128xf32, #tpu.memory_space<vmem>>, %arg2: memref<1x128xf32, #tpu.memory_space<vmem>>, %arg3: memref<1x128xf32, #tpu.memory_space<vmem>>, %arg4: memref<128x128xf32, #tpu.memory_space<vmem>>, %arg5: memref<1x128xf32, #tpu.memory_space<vmem>>, %arg6: memref<8x128xf32, #tpu.memory_space<vmem>>) attributes {dimension_semantics = [#tpu.dimension_semantics<parallel>], iteration_bounds = array<i64: 2>, scalar_prefetch = 0 : i64, scratch_operands = 0 : i64, tpu.core_type = #tpu.core_type<tc>, window_params = [{transform_indices = @transform_0, window_bounds = array<i64: 8, 128>}, {pipeline_mode = #tpu.pipeline_mode<synchronous>, transform_indices = @transform_1, window_bounds = array<i64: 1, 128>}, {pipeline_mode = #tpu.pipeline_mode<synchronous>, transform_indices = @transform_2, window_bounds = array<i64: 1, 128>}, {pipeline_mode = #tpu.pipeline_mode<synchronous>, transform_indices = @transform_3, window_bounds = array<i64: 128, 128>}, {pipeline_mode = #tpu.pipeline_mode<synchronous>, transform_indices = @transform_4, window_bounds = array<i64: 1, 128>}, {transform_indices = @transform_5, window_bounds = array<i64: 8, 128>}]} {
    %c0 = arith.constant 0 : index
    %c0_0 = arith.constant 0 : index
    %0 = vector.load %arg1[%c0, %c0_0] : memref<8x128xf32, #tpu.memory_space<vmem>>, vector<8x128xf32>
    %cst = arith.constant dense<0.000000e+00> : vector<8xf32>
    %1 = vector.multi_reduction <add>, %0, %cst [1] : vector<8x128xf32> to vector<8xf32>
    %2 = vector.shape_cast %1 : vector<8xf32> to vector<8x1xf32>
    %cst_1 = arith.constant 1.280000e+02 : f32
    %3 = vector.broadcast %cst_1 : f32 to vector<8x1xf32>
    %4 = arith.divf %2, %3 : vector<8x1xf32>
    %5 = vector.broadcast %4 : vector<8x1xf32> to vector<8x128xf32>
    %6 = arith.subf %0, %5 : vector<8x128xf32>
    %7 = arith.mulf %6, %6 : vector<8x128xf32>
    %cst_2 = arith.constant dense<0.000000e+00> : vector<8xf32>
    %8 = vector.multi_reduction <add>, %7, %cst_2 [1] : vector<8x128xf32> to vector<8xf32>
    %9 = vector.shape_cast %8 : vector<8xf32> to vector<8x1xf32>
    %cst_3 = arith.constant 0.00787401571 : f32
    %10 = vector.broadcast %cst_3 : f32 to vector<8x1xf32>
    %11 = arith.mulf %9, %10 : vector<8x1xf32>
    %12 = math.sqrt %11 : vector<8x1xf32>
    %cst_4 = arith.constant 9.99999997E-7 : f32
    %13 = vector.broadcast %cst_4 : f32 to vector<8x1xf32>
    %14 = arith.addf %12, %13 : vector<8x1xf32>
    %15 = tpu.reciprocal %14 {approx = true} : vector<8x1xf32> -> vector<8x1xf32>
    %c0_5 = arith.constant 0 : index
    %c0_6 = arith.constant 0 : index
    %16 = vector.load %arg2[%c0_5, %c0_6] : memref<1x128xf32, #tpu.memory_space<vmem>>, vector<1x128xf32>
    %17 = vector.broadcast %15 : vector<8x1xf32> to vector<8x128xf32>
    %18 = arith.mulf %6, %17 : vector<8x128xf32>
    %19 = vector.broadcast %16 : vector<1x128xf32> to vector<8x128xf32>
    %20 = arith.mulf %19, %18 : vector<8x128xf32>
    %c0_7 = arith.constant 0 : index
    %c0_8 = arith.constant 0 : index
    %21 = vector.load %arg3[%c0_7, %c0_8] : memref<1x128xf32, #tpu.memory_space<vmem>>, vector<1x128xf32>
    %22 = vector.broadcast %21 : vector<1x128xf32> to vector<8x128xf32>
    %23 = arith.addf %20, %22 : vector<8x128xf32>
    %c0_9 = arith.constant 0 : index
    %c0_10 = arith.constant 0 : index
    %24 = vector.load %arg4[%c0_9, %c0_10] : memref<128x128xf32, #tpu.memory_space<vmem>>, vector<128x128xf32>
    %cst_11 = arith.constant dense<0.000000e+00> : vector<8x128xf32>
    %25 = tpu.matmul %23, %24, %cst_11 {dimension_numbers = #tpu.dot_dimension_numbers<[1], [0], [0], [1], [0, 0, 1, 1], [], []>} : vector<8x128xf32>, vector<128x128xf32>, vector<8x128xf32> -> vector<8x128xf32>
    %c0_12 = arith.constant 0 : index
    %c0_13 = arith.constant 0 : index
    %26 = vector.load %arg5[%c0_12, %c0_13] : memref<1x128xf32, #tpu.memory_space<vmem>>, vector<1x128xf32>
    %27 = vector.broadcast %26 : vector<1x128xf32> to vector<8x128xf32>
    %28 = arith.addf %25, %27 : vector<8x128xf32>
    %29 = arith.addf %0, %28 : vector<8x128xf32>
    %c0_14 = arith.constant 0 : index
    %c0_15 = arith.constant 0 : index
    %30 = vector.load %arg6[%c0_14, %c0_15] : memref<8x128xf32, #tpu.memory_space<vmem>>, vector<8x128xf32>
    tpu.vector_store %arg6[%c0_14, %c0_15], %29 {strides = array<i32>} : memref<8x128xf32, #tpu.memory_space<vmem>>, vector<8x128xf32>,
    return
  }
  func.func @transform_0(%arg0: i32) -> (i32, i32) {
    %c0_i32 = arith.constant 0 : i32
    %c0_i32_0 = arith.constant 0 : i32
    return %arg0, %c0_i32 : i32, i32
  }
  func.func @transform_1(%arg0: i32) -> (i32, i32) {
    %c0_i32 = arith.constant 0 : i32
    %c0_i32_0 = arith.constant 0 : i32
    %c0_i32_1 = arith.constant 0 : i32
    return %c0_i32, %c0_i32_0 : i32, i32
  }
  func.func @transform_2(%arg0: i32) -> (i32, i32) {
    %c0_i32 = arith.constant 0 : i32
    %c0_i32_0 = arith.constant 0 : i32
    %c0_i32_1 = arith.constant 0 : i32
    return %c0_i32, %c0_i32_0 : i32, i32
  }
  func.func @transform_3(%arg0: i32) -> (i32, i32) {
    %c0_i32 = arith.constant 0 : i32
    %c0_i32_0 = arith.constant 0 : i32
    %c0_i32_1 = arith.constant 0 : i32
    return %c0_i32, %c0_i32_0 : i32, i32
  }
  func.func @transform_4(%arg0: i32) -> (i32, i32) {
    %c0_i32 = arith.constant 0 : i32
    %c0_i32_0 = arith.constant 0 : i32
    %c0_i32_1 = arith.constant 0 : i32
    return %c0_i32, %c0_i32_0 : i32, i32
  }
  func.func @transform_5(%arg0: i32) -> (i32, i32) {
    %c0_i32 = arith.constant 0 : i32
    %c0_i32_0 = arith.constant 0 : i32
    return %arg0, %c0_i32 : i32, i32
  }
}

</mosaic_0001>

<llo_original>
// kernel: run_fused.1
$region0: #{run_fused.1}
  #allocation0 [shape = 'u32[]', space=smem, size = 0x4, offset = 0x4, fixed_abs, tag = 'smem constant byte address 0x4 - core index']
  #allocation1 [shape = 'u32[144,128]{1,0:T(1,128)}', space=vmem, size = 0x12000, scoped, tag = 'internal scratch']
  %s0 = inlined_call_operand.hbm [shape: f32[16,128], index: 0, kind: input, shape index: {}]
  %s1 = inlined_call_operand.hbm [shape: f32[1,128], index: 1, kind: input, shape index: {}]
  %s2 = inlined_call_operand.hbm [shape: f32[1,128], index: 2, kind: input, shape index: {}]
  %s3 = inlined_call_operand.hbm [shape: f32[128,128], index: 3, kind: input, shape index: {}]
  %s4 = inlined_call_operand.hbm [shape: f32[1,128], index: 4, kind: input, shape index: {}]
  %s5 = inlined_call_operand.hbm [shape: f32[16,128], index: 5, kind: output, shape index: {}]
  %s6 = sld [smem:[#allocation0]]
  $region73: #{run_fused.1} parent=0
    _
  %s8 = ssub.s32 1, %s6
  %s9 = scalar_select 0, %s8, %s6
  $region1: #{run_fused.1} parent=0
    #allocation2 [shape = 'u8[8192]{0}', space=vmem, size = 0x2000, scoped, tag = 'input window, operand 0']
    #allocation3 [shape = 's32[2]{0}', space=sflag, size = 0x8, scoped, tag = 'scoped memory for run_fused.1']
    #allocation4 [shape = 's32[2]{0}', space=sflag, size = 0x8, scoped, tag = 'scoped memory for run_fused.1']
    #allocation5 [shape = 'u8[512]{0}', space=vmem, size = 0x400, scoped, tag = 'input window, operand 1, single buffered']
    #allocation6 [shape = 's32[1]{0}', space=sflag, size = 0x4, scoped, tag = 'scoped memory for run_fused.1']
    #allocation7 [shape = 'u8[512]{0}', space=vmem, size = 0x400, scoped, tag = 'input window, operand 2, single buffered']
    #allocation8 [shape = 'u8[65536]{0}', space=vmem, size = 0x10000, scoped, tag = 'input window, operand 3, single buffered']
    #allocation9 [shape = 's32[1]{0}', space=sflag, size = 0x4, scoped, tag = 'scoped memory for run_fused.1']
    #allocation10 [shape = 'u8[512]{0}', space=vmem, size = 0x400, scoped, tag = 'input window, operand 4, single buffered']
    #allocation11 [shape = 'u8[8192]{0}', space=vmem, size = 0x2000, scoped, tag = 'output window, operand 0']
    %10 = vsyncpa [#allocation3], 0
    %s11 = scalar_lea.sflag [#allocation3], 1
    %12 = vsyncpa %s11, 0
    %13 = vsyncpa [#allocation6], 0
    %14 = vsyncpa [#allocation9], 0
    %15 = vsyncpa [#allocation4], 0
    %s16 = scalar_lea.sflag [#allocation4], 1
    %17 = vsyncpa %s16, 0
    loop: start=0, step=1, limit=4
    $region2: #{run_fused.1} parent=1 // loop_pre_header
      _
    $region3: #{run_fused.1} parent=1 // loop_header
      %s19 = sphi 0, %s23
      %p20 = scmp.ge.s32.totalorder %s19, 4
      %s29 = sphi 0, %s31
      %s32 = sphi 0, %s29
      %s33 = sphi 0, %s32
      %s49 = sphi 0, %s33
      %s53 = sphi 0, %s53
      %s55 = sphi 0, %s53
      %s56 = sphi 0, %s55
      %s70 = sphi 0, %s56
      %s74 = sphi 0, %s74
      %s76 = sphi 0, %s74
      %s77 = sphi 0, %s76
      %s91 = sphi 0, %s77
      %s95 = sphi 0, %s95
      %s97 = sphi 0, %s95
      %s98 = sphi 0, %s97
      %s112 = sphi 0, %s98
      %s116 = sphi 0, %s116
      %s118 = sphi 0, %s116
      %s119 = sphi 0, %s118
      %s133 = sphi 0, %s119
      %s139 = sphi 0, %s141
      %s142 = sphi 0, %s139
      %s143 = sphi 0, %s142
      %s159 = sphi 0, %s143
    $region4: #{run_fused.1} parent=1 // loop_header_branch
      %22 = sbr.rel (%p20) target = $region8
    $region5: #{run_fused.1} parent=1 // loop_body
      %s24 = ssub.s32 %s19, 1
      %s25 = ssub.s32 %s19, 2
      %s26 = sadd.s32 %s19, 1
      %s27 = ssub.s32 %s19, %s26
      %p28 = scmp.eq.s32.totalorder %s27, 0
      %s30 = sadd.s32 %s29, 1
      %s31 = scalar_select %p28, %s29, %s30
      %p34 = pneg %p28
      %p35 = scmp.eq.s32.totalorder %s19, 1
      %p36 = por %p34, %p35
      %p37 = scmp.ne.s32.totalorder %s29, %s32
      %p38 = scmp.eq.s32.totalorder %s19, 0
      %p39 = por %p37, %p38
      %p40 = scmp.ne.s32.totalorder %s29, %s32
      %p41 = scmp.eq.s32.totalorder %s24, 1
      %p42 = por %p40, %p41
      %p43 = scmp.ne.s32.totalorder %s32, %s33
      %p44 = scmp.eq.s32.totalorder %s24, 0
      %p45 = por %p43, %p44
      %p46 = scmp.ne.s32.totalorder %s32, %s33
      %p47 = scmp.eq.s32.totalorder %s25, 1
      %p48 = por %p46, %p47
      %p50 = scmp.ne.s32.totalorder %s33, %s49
      %p51 = scmp.eq.s32.totalorder %s25, 0
      %p52 = por %p50, %p51
      %s54 = sadd.s32 %s53, 1
      %p57 = scmp.eq.s32.totalorder %s19, 1
      %p58 = scmp.ne.s32.totalorder %s53, %s55
      %p59 = scmp.eq.s32.totalorder %s19, 0
      %p60 = por %p58, %p59
      %p61 = scmp.ne.s32.totalorder %s53, %s55
      %p62 = scmp.eq.s32.totalorder %s24, 1
      %p63 = por %p61, %p62
      %p64 = scmp.ne.s32.totalorder %s55, %s56
      %p65 = scmp.eq.s32.totalorder %s24, 0
      %p66 = por %p64, %p65
      %p67 = scmp.ne.s32.totalorder %s55, %s56
      %p68 = scmp.eq.s32.totalorder %s25, 1
      %p69 = por %p67, %p68
      %p71 = scmp.ne.s32.totalorder %s56, %s70
      %p72 = scmp.eq.s32.totalorder %s25, 0
      %p73 = por %p71, %p72
      %s75 = sadd.s32 %s74, 1
      %p78 = scmp.eq.s32.totalorder %s19, 1
      %p79 = scmp.ne.s32.totalorder %s74, %s76
      %p80 = scmp.eq.s32.totalorder %s19, 0
      %p81 = por %p79, %p80
      %p82 = scmp.ne.s32.totalorder %s74, %s76
      %p83 = scmp.eq.s32.totalorder %s24, 1
      %p84 = por %p82, %p83
      %p85 = scmp.ne.s32.totalorder %s76, %s77
      %p86 = scmp.eq.s32.totalorder %s24, 0
      %p87 = por %p85, %p86
      %p88 = scmp.ne.s32.totalorder %s76, %s77
      %p89 = scmp.eq.s32.totalorder %s25, 1
      %p90 = por %p88, %p89
      %p92 = scmp.ne.s32.totalorder %s77, %s91
      %p93 = scmp.eq.s32.totalorder %s25, 0
      %p94 = por %p92, %p93
      %s96 = sadd.s32 %s95, 1
      %p99 = scmp.eq.s32.totalorder %s19, 1
      %p100 = scmp.ne.s32.totalorder %s95, %s97
      %p101 = scmp.eq.s32.totalorder %s19, 0
      %p102 = por %p100, %p101
      %p103 = scmp.ne.s32.totalorder %s95, %s97
      %p104 = scmp.eq.s32.totalorder %s24, 1
      %p105 = por %p103, %p104
      %p106 = scmp.ne.s32.totalorder %s97, %s98
      %p107 = scmp.eq.s32.totalorder %s24, 0
      %p108 = por %p106, %p107
      %p109 = scmp.ne.s32.totalorder %s97, %s98
      %p110 = scmp.eq.s32.totalorder %s25, 1
      %p111 = por %p109, %p110
      %p113 = scmp.ne.s32.totalorder %s98, %s112
      %p114 = scmp.eq.s32.totalorder %s25, 0
      %p115 = por %p113, %p114
      %s117 = sadd.s32 %s116, 1
      %p120 = scmp.eq.s32.totalorder %s19, 1
      %p121 = scmp.ne.s32.totalorder %s116, %s118
      %p122 = scmp.eq.s32.totalorder %s19, 0
      %p123 = por %p121, %p122
      %p124 = scmp.ne.s32.totalorder %s116, %s118
      %p125 = scmp.eq.s32.totalorder %s24, 1
      %p126 = por %p124, %p125
      %p127 = scmp.ne.s32.totalorder %s118, %s119
      %p128 = scmp.eq.s32.totalorder %s24, 0
      %p129 = por %p127, %p128
      %p130 = scmp.ne.s32.totalorder %s118, %s119
      %p131 = scmp.eq.s32.totalorder %s25, 1
      %p132 = por %p130, %p131
      %p134 = scmp.ne.s32.totalorder %s119, %s133
      %p135 = scmp.eq.s32.totalorder %s25, 0
      %p136 = por %p134, %p135
      %s137 = ssub.s32 %s19, %s26
      %p138 = scmp.eq.s32.totalorder %s137, 0
      %s140 = sadd.s32 %s139, 1
      %s141 = scalar_select %p138, %s139, %s140
      %p144 = pneg %p138
      %p145 = scmp.eq.s32.totalorder %s19, 1
      %p146 = por %p144, %p145
      %p147 = scmp.ne.s32.totalorder %s139, %s142
      %p148 = scmp.eq.s32.totalorder %s19, 0
      %p149 = por %p147, %p148
      %p150 = scmp.ne.s32.totalorder %s139, %s142
      %p151 = scmp.eq.s32.totalorder %s24, 1
      %p152 = por %p150, %p151
      %p153 = scmp.ne.s32.totalorder %s142, %s143
      %p154 = scmp.eq.s32.totalorder %s24, 0
      %p155 = por %p153, %p154
      %p156 = scmp.ne.s32.totalorder %s142, %s143
      %p157 = scmp.eq.s32.totalorder %s25, 1
      %p158 = por %p156, %p157
      %p160 = scmp.ne.s32.totalorder %s143, %s159
      %p161 = scmp.eq.s32.totalorder %s25, 0
      %p162 = por %p160, %p161
      %p163 = scmp.le.s32.totalorder 1, %s19
      %p164 = scmp.lt.s32.totalorder %s19, 3
      %p165 = pnand %p163, %p164
      %p166 = pneg %p165
      // Predicated region
      $region9: #{run_fused.1} parent=5 // pred_check
        _
      $region10: #{run_fused.1} parent=5 // pred_check_branch
        %168 = sbr.rel (%p165) target = $region12
      $region11: #{run_fused.1} parent=5 // pred_region
        %s169 = ssub.s32 %s19, 1
        // Predicated region
        $region13: #{run_fused.1} parent=11 // pred_check
          %p170 = pneg %p66
        $region14: #{run_fused.1} parent=11 // pred_check_branch
          %172 = sbr.rel (%p170) target = $region16
        $region15: #{run_fused.1} parent=11 // pred_region
          %s174 = ssub.s32 16, 16
          %175 = vsyncadd [#allocation6], %s174
          %s177 = sshll.u32 [#allocation5], 4
          %s178 = int_to_ptr.vmem [resolvable:$true] %s177
          %180 = dma.hbm_to_vmem [thread:$0]  %s1, 16, %s178, [#allocation6]
        $region16: #{run_fused.1} parent=11 // pred_fallthru
          _
        // Predicated region
        $region17: #{run_fused.1} parent=11 // pred_check
          %p181 = pneg %p87
        $region18: #{run_fused.1} parent=11 // pred_check_branch
          %183 = sbr.rel (%p181) target = $region20
        $region19: #{run_fused.1} parent=11 // pred_region
          %s185 = ssub.s32 16, 16
          %186 = vsyncadd [#allocation6], %s185
          %s188 = sshll.u32 [#allocation7], 4
          %s189 = int_to_ptr.vmem [resolvable:$true] %s188
          %191 = dma.hbm_to_vmem [thread:$0]  %s2, 16, %s189, [#allocation6]
        $region20: #{run_fused.1} parent=11 // pred_fallthru
          _
        // Predicated region
        $region21: #{run_fused.1} parent=11 // pred_check
          %p192 = pneg %p108
        $region22: #{run_fused.1} parent=11 // pred_check_branch
          %194 = sbr.rel (%p192) target = $region24
        $region23: #{run_fused.1} parent=11 // pred_region
          %s196 = ssub.s32 2048, 2048
          %197 = vsyncadd [#allocation9], %s196
          %s198 = sshll.u32 [#allocation8], 4
          %s199 = int_to_ptr.vmem [resolvable:$true] %s198
          %204 = dma.hbm_to_vmem [thread:$0]  %s3, 2048, %s199, [#allocation9], 128, 128, 8
        $region24: #{run_fused.1} parent=11 // pred_fallthru
          _
        // Predicated region
        $region25: #{run_fused.1} parent=11 // pred_check
          %p205 = pneg %p129
        $region26: #{run_fused.1} parent=11 // pred_check_branch
          %207 = sbr.rel (%p205) target = $region28
        $region27: #{run_fused.1} parent=11 // pred_region
          %s209 = ssub.s32 16, 16
          %210 = vsyncadd [#allocation9], %s209
          %s212 = sshll.u32 [#allocation10], 4
          %s213 = int_to_ptr.vmem [resolvable:$true] %s212
          %215 = dma.hbm_to_vmem [thread:$0]  %s4, 16, %s213, [#allocation9]
        $region28: #{run_fused.1} parent=11 // pred_fallthru
          _
      $region12: #{run_fused.1} parent=5 // pred_fallthru
        _
      %p216 = scmp.lt.s32.totalorder %s19, 2
      // Predicated region
      $region29: #{run_fused.1} parent=5 // pred_check
        %p217 = pneg %p216
      $region30: #{run_fused.1} parent=5 // pred_check_branch
        %219 = sbr.rel (%p217) target = $region32
      $region31: #{run_fused.1} parent=5 // pred_region
        // Predicated region
        $region33: #{run_fused.1} parent=31 // pred_check
          %p220 = pneg %p39
        $region34: #{run_fused.1} parent=31 // pred_check_branch
          %222 = sbr.rel (%p220) target = $region36
        $region35: #{run_fused.1} parent=31 // pred_region
          %s223 = sand.u32 %s29, 1
          %s224 = scalar_lea.sflag [#allocation3], %s223
          %s225 = sand.u32 %s29, 1
          %s226 = smul.addr %s225, 8
          %s227 = scalar_lea.vmem [#allocation2], %s226
          %s229 = ssub.s32 128, 128
          %230 = vsyncadd %s224, %s229
          %s231 = smul.addr %s19, 128
          %s232 = scalar_lea.hbm %s0, %s231
          %s234 = sshll.u32 %s227, 4
          %s235 = int_to_ptr.vmem [resolvable:$true] %s234
          %237 = dma.hbm_to_vmem [thread:$0]  %s232, 128, %s235, %s224
        $region36: #{run_fused.1} parent=31 // pred_fallthru
          _
      $region32: #{run_fused.1} parent=5 // pred_fallthru
        _
      %p238 = scmp.le.s32.totalorder 1, %s19
      %p239 = scmp.lt.s32.totalorder %s19, 3
      %p240 = pnand %p238, %p239
      %p241 = pneg %p240
      // Predicated region
      $region37: #{run_fused.1} parent=5 // pred_check
        _
      $region38: #{run_fused.1} parent=5 // pred_check_branch
        %243 = sbr.rel (%p240) target = $region40
      $region39: #{run_fused.1} parent=5 // pred_region
        %s244 = ssub.s32 %s19, 1
        %s245 = sand.u32 %s32, 1
        %s246 = scalar_lea.sflag [#allocation3], %s245
        %s247 = sand.u32 %s32, 1
        %s248 = smul.addr %s247, 8
        %s249 = scalar_lea.vmem [#allocation2], %s248
        // Predicated region
        $region41: #{run_fused.1} parent=39 // pred_check
          %p250 = pneg %p45
        $region42: #{run_fused.1} parent=39 // pred_check_branch
          %252 = sbr.rel (%p250) target = $region44
        $region43: #{run_fused.1} parent=39 // pred_region
          %253 = dma.done %s246, 128
        $region44: #{run_fused.1} parent=39 // pred_fallthru
          _
        // Predicated region
        $region45: #{run_fused.1} parent=39 // pred_check
          %p254 = pneg %p66
        $region46: #{run_fused.1} parent=39 // pred_check_branch
          %256 = sbr.rel (%p254) target = $region48
        $region47: #{run_fused.1} parent=39 // pred_region
          %257 = dma.done [#allocation6], 16
        $region48: #{run_fused.1} parent=39 // pred_fallthru
          _
        // Predicated region
        $region49: #{run_fused.1} parent=39 // pred_check
          %p258 = pneg %p87
        $region50: #{run_fused.1} parent=39 // pred_check_branch
          %260 = sbr.rel (%p258) target = $region52
        $region51: #{run_fused.1} parent=39 // pred_region
          %261 = dma.done [#allocation6], 16
        $region52: #{run_fused.1} parent=39 // pred_fallthru
          _
        // Predicated region
        $region53: #{run_fused.1} parent=39 // pred_check
          %p262 = pneg %p108
        $region54: #{run_fused.1} parent=39 // pred_check_branch
          %264 = sbr.rel (%p262) target = $region56
        $region55: #{run_fused.1} parent=39 // pred_region
          %265 = dma.done [#allocation9], 2048
        $region56: #{run_fused.1} parent=39 // pred_fallthru
          _
        // Predicated region
        $region57: #{run_fused.1} parent=39 // pred_check
          %p266 = pneg %p129
        $region58: #{run_fused.1} parent=39 // pred_check_branch
          %268 = sbr.rel (%p266) target = $region60
        $region59: #{run_fused.1} parent=39 // pred_region
          %269 = dma.done [#allocation9], 16
        $region60: #{run_fused.1} parent=39 // pred_fallthru
          _
        %s270 = sand.u32 %s32, 1
        %s271 = scalar_lea.sflag [#allocation3], %s270
        %s272 = sand.u32 %s32, 1
        %s273 = smul.addr %s272, 8
        %s274 = scalar_lea.vmem [#allocation2], %s273
        %p275 = pneg %p45
        %p276 = pneg %p42
        %p277 = pneg %p66
        %p278 = pneg %p63
        %p279 = pneg %p87
        %p280 = pneg %p84
        %p281 = pneg %p108
        %p282 = pneg %p105
        %p283 = pneg %p129
        %p284 = pneg %p126
        %p285 = pneg %p155
        %p286 = pneg %p152
        %s287 = sand.u32 %s142, 1
        %s288 = scalar_lea.sflag [#allocation4], %s287
        %s289 = sand.u32 %s142, 1
        %s290 = smul.addr %s289, 8
        %s291 = scalar_lea.vmem [#allocation11], %s290
        %v292 = vld [vmem:[%s249] sm:$0xff]
        %293 = vadd.xlane.f32.xlu0 %v292
        %v294 = vpop.xlane.xlu0 %293
        %v295 = vrcp.pop 128.0
        %v296 = vmul.f32 %v294, %v295
        %v297 = vsub.f32 %v292, %v296
        %v298 = vmul.f32 %v297, %v297
        %299 = vadd.xlane.f32.xlu0 %v298
        %v300 = vpop.xlane.xlu0 %299
        %v301 = vmul.f32 %v300, 0.007874016
        %v302 = vrsqrt.pop %v301
        %v303 = vmul.f32 %v301, %v302
        %vm304 = vcmp.eq.f32.partialorder %v301, inf
        %v305 = vsel %vm304, %v301, %v303
        %vm306 = vcmp.eq.f32.partialorder %v301, 0.0
        %v307 = vand.u32 %v301, 2147483648
        %v308 = vsel %vm306, %v307, %v305
        %v309 = vadd.f32 %v308, 1e-06
        %v310 = vrcp.pop %v309
        %v311 = vld [vmem:[#allocation5] sm:$0x1]
        %v312 = vmul.f32 %v297, %v310
        %v314 = vlaneseq
        %v315 = vshrl.u32 %v314, 7
        %v316 = vsub.s32 0, %v315
        %v317 = vrot.slane %v311, %v316
        %v319 = vmul.f32 %v317, %v312
        %v320 = vld [vmem:[#allocation7] sm:$0x1]
        %v322 = vlaneseq
        %v323 = vshrl.u32 %v322, 7
        %v324 = vsub.s32 0, %v323
        %v325 = vrot.slane %v320, %v324
        %v327 = vadd.f32 %v319, %v325
        %v328 = vld [vmem:[#allocation8] sm:$0xff]
        %v329 = vld [vmem:[#allocation8 + $0x8] sm:$0xff]
        %v330 = vld [vmem:[#allocation8 + $0x10] sm:$0xff]
        %v331 = vld [vmem:[#allocation8 + $0x18] sm:$0xff]
        %v332 = vld [vmem:[#allocation8 + $0x20] sm:$0xff]
        %v333 = vld [vmem:[#allocation8 + $0x28] sm:$0xff]
        %v334 = vld [vmem:[#allocation8 + $0x30] sm:$0xff]
        %v335 = vld [vmem:[#allocation8 + $0x38] sm:$0xff]
        %v336 = vld [vmem:[#allocation8 + $0x40] sm:$0xff]
        %v337 = vld [vmem:[#allocation8 + $0x48] sm:$0xff]
        %v338 = vld [vmem:[#allocation8 + $0x50] sm:$0xff]
        %v339 = vld [vmem:[#allocation8 + $0x58] sm:$0xff]
        %v340 = vld [vmem:[#allocation8 + $0x60] sm:$0xff]
        %v341 = vld [vmem:[#allocation8 + $0x68] sm:$0xff]
        %v342 = vld [vmem:[#allocation8 + $0x70] sm:$0xff]
        %v343 = vld [vmem:[#allocation8 + $0x78] sm:$0xff]
        %v344 = vld [vmem:[#allocation10] sm:$0x1]
        %v346 = vlaneseq
        %v347 = vshrl.u32 %v346, 7
        %v348 = vsub.s32 0, %v347
        %v349 = vrot.slane %v344, %v348
        %351 = vmatprep.subr.mxu0 0.0
        %352 = vmatpush1.msra.mxu0 %v328
        %353 = vmatprep.subr.mxu0 0.0
        %354 = vmatpush1.msra.mxu0 %v329
        %355 = vmatprep.subr.mxu0 0.0
        %356 = vmatpush1.msra.mxu0 %v330
        %357 = vmatprep.subr.mxu0 0.0
        %358 = vmatpush1.msra.mxu0 %v331
        %359 = vmatprep.subr.mxu0 0.0
        %360 = vmatpush1.msra.mxu0 %v332
        %361 = vmatprep.subr.mxu0 0.0
        %362 = vmatpush1.msra.mxu0 %v333
        %363 = vmatprep.subr.mxu0 0.0
        %364 = vmatpush1.msra.mxu0 %v334
        %365 = vmatprep.subr.mxu0 0.0
        %366 = vmatpush1.msra.mxu0 %v335
        %367 = vmatprep.subr.mxu0 0.0
        %368 = vmatpush1.msra.mxu0 %v336
        %369 = vmatprep.subr.mxu0 0.0
        %370 = vmatpush1.msra.mxu0 %v337
        %371 = vmatprep.subr.mxu0 0.0
        %372 = vmatpush1.msra.mxu0 %v338
        %373 = vmatprep.subr.mxu0 0.0
        %374 = vmatpush1.msra.mxu0 %v339
        %375 = vmatprep.subr.mxu0 0.0
        %376 = vmatpush1.msra.mxu0 %v340
        %377 = vmatprep.subr.mxu0 0.0
        %378 = vmatpush1.msra.mxu0 %v341
        %379 = vmatprep.subr.mxu0 0.0
        %380 = vmatpush1.msra.mxu0 %v342
        %381 = vmatprep.subr.mxu0 0.0
        %382 = vmatpush1.msra.mxu0 %v343
        %383 = vmatprep.subr.mxu0 0.0
        %384 = vmatpush1.msra.mxu0 0.0
        %385 = vmatprep.subr.mxu0 0.0
        %386 = vmatpush1.msra.mxu0 0.0
        %387 = vmatprep.subr.mxu0 0.0
        %388 = vmatpush1.msra.mxu0 0.0
        %389 = vmatprep.subr.mxu0 0.0
        %390 = vmatpush1.msra.mxu0 0.0
        %391 = vmatprep.subr.mxu0 0.0
        %392 = vmatpush1.msra.mxu0 0.0
        %393 = vmatprep.subr.mxu0 0.0
        %394 = vmatpush1.msra.mxu0 0.0
        %395 = vmatprep.subr.mxu0 0.0
        %396 = vmatpush1.msra.mxu0 0.0
        %397 = vmatprep.subr.mxu0 0.0
        %398 = vmatpush1.msra.mxu0 0.0
        %399 = vmatprep.subr.mxu0 0.0
        %400 = vmatpush1.msra.mxu0 0.0
        %401 = vmatprep.subr.mxu0 0.0
        %402 = vmatpush1.msra.mxu0 0.0
        %403 = vmatprep.subr.mxu0 0.0
        %404 = vmatpush1.msra.mxu0 0.0
        %405 = vmatprep.subr.mxu0 0.0
        %406 = vmatpush1.msra.mxu0 0.0
        %407 = vmatprep.subr.mxu0 0.0
        %408 = vmatpush1.msra.mxu0 0.0
        %409 = vmatprep.subr.mxu0 0.0
        %410 = vmatpush1.msra.mxu0 0.0
        %411 = vmatprep.subr.mxu0 0.0
        %412 = vmatpush1.msra.mxu0 0.0
        %413 = vmatprep.subr.mxu0 0.0
        %414 = vmatpush1.msra.mxu0 0.0
        %415 = vmatprep.mubr.f32.mxu0 0.0
        %416 = vmatmul.mubr.f32.gmra.mrb[0].mxu0 %v327
        %v417 = vpop.f32.mrb[0].mxu0
        %v418 = vadd.f32 %v349, %v417
        %v419 = vpop.f32.mrb[0].mxu0
        %420 = vdwg.mxu0
        %v421 = vadd.f32 %v292, %v418
        %422 = vst [vmem:[%s291] sm:$0xff] %v421
        %s423 = sand.u32 %s142, 1
        %s424 = scalar_lea.sflag [#allocation4], %s423
        %s425 = sand.u32 %s142, 1
        %s426 = smul.addr %s425, 8
        %s427 = scalar_lea.vmem [#allocation11], %s426
        // Predicated region
        $region61: #{run_fused.1} parent=39 // pred_check
          %p428 = pneg %p152
        $region62: #{run_fused.1} parent=39 // pred_check_branch
          %430 = sbr.rel (%p428) target = $region64
        $region63: #{run_fused.1} parent=39 // pred_region
          %s432 = ssub.s32 128, 128
          %433 = vsyncadd %s424, %s432
          %s434 = smul.addr %s24, 128
          %s435 = scalar_lea.hbm %s5, %s434
          %s437 = sshll.u32 %s427, 4
          %s438 = int_to_ptr.vmem [resolvable:$true] %s437
          %440 = dma.vmem_to_hbm [thread:$0]  %s438, 128, %s435, %s424
        $region64: #{run_fused.1} parent=39 // pred_fallthru
          _
      $region40: #{run_fused.1} parent=5 // pred_fallthru
        _
      %p441 = scmp.le.s32.totalorder 2, %s19
      // Predicated region
      $region65: #{run_fused.1} parent=5 // pred_check
        %p442 = pneg %p441
      $region66: #{run_fused.1} parent=5 // pred_check_branch
        %444 = sbr.rel (%p442) target = $region68
      $region67: #{run_fused.1} parent=5 // pred_region
        %s445 = ssub.s32 %s19, 2
        // Predicated region
        $region69: #{run_fused.1} parent=67 // pred_check
          %p446 = pneg %p158
        $region70: #{run_fused.1} parent=67 // pred_check_branch
          %448 = sbr.rel (%p446) target = $region72
        $region71: #{run_fused.1} parent=67 // pred_region
          %s449 = sand.u32 %s143, 1
          %s450 = scalar_lea.sflag [#allocation4], %s449
          %s451 = sand.u32 %s143, 1
          %s452 = smul.addr %s451, 8
          %s453 = scalar_lea.vmem [#allocation11], %s452
          %454 = dma.done %s450, 128
        $region72: #{run_fused.1} parent=67 // pred_fallthru
          _
      $region68: #{run_fused.1} parent=5 // pred_fallthru
        _
    $region6: #{run_fused.1} parent=1 // loop_footer
      %s23 = sadd.s32 1, %s19
    $region7: #{run_fused.1} parent=1 // loop_footer_branch
      %18 = sbr.rel target = $region3
    $region8: #{run_fused.1} parent=1 // loop_exit
      _
    %455 = vsyncpa [#allocation3], 1
    %s456 = scalar_lea.sflag [#allocation3], 1
    %457 = vsyncpa %s456, 1
    %458 = vsyncpa [#allocation6], 1
    %459 = vsyncpa [#allocation9], 1
    %460 = vsyncpa [#allocation4], 1
    %s461 = scalar_lea.sflag [#allocation4], 1
    %462 = vsyncpa %s461, 1

</llo_original>
